<compile_context>
chip_gen: v5e
topology: v5e:2x2
jax: 0.10.0
libtpu: 0.0.40
codegen_flags: <defaults>
</compile_context>

<pallas_src>
import math
from functools import partial

import numpy as np
import jax
import jax.numpy as jnp
from jax.experimental import pallas as pl
from jax.experimental.pallas import tpu as pltpu


# ---------------------------------------------------------------------------
# Model hyper-parameters (mirroring Diffusion.__init__ defaults)
# ---------------------------------------------------------------------------
DIM_C = 4                        # dim_c : conditioning-variable width
DIM_T = 32                       # dim_t_emb : time / cond embedding width
HALF_DIM = DIM_T // 2
DIM_H1 = 128                     # cond_emb hidden 1
DIM_H2 = 64                      # cond_emb hidden 2 (LayerNorm width)
DIM_R, DIM_A, DIM_V = 4, 8, 16   # backbone's (dim_r, dim_a, dim_v)
F_FLAT = DIM_R * DIM_A * DIM_V   # 512
LN_EPS = 1e-5
CT_W = 8                         # packed (c | t | zero-pad) lane width
WBIG_ROWS = 104                  # [W_fused(64); wz_tc(32); bz_fused(1)] padded to 104
TB_MAX = 2048                    # max batch tile (x+out double-buffered = 16 MiB f32)
VMEM_LIMIT = 48 * 1024 * 1024    # explicit scoped-VMEM budget (ok for v5e/v6e/v7x)


def _round_up(n, m):
    return ((n + m - 1) // m) * m


# ---------------------------------------------------------------------------
# Pallas kernel (one batch tile per grid step)
# ---------------------------------------------------------------------------
def _diffusion_fwd_kernel(
    x_ref,      # (TB, F_FLAT)    flattened x_in tile (f32 or bf16)
    ct_ref,     # (TB, CT_W)      lanes 0:4 = c_in, lane 4 = t_in (f32)
    vec_ref,    # (8, 128)        packed: b1 | b2 | freq_interleaved
    w1_ref,     # (8, 128)        Linear(4->128) weight, rows 4:8 zero
    w2_ref,     # (128, 64)       Linear(128->64) weight
    wbig_ref,   # (WBIG_ROWS, F)  rows 0:64 W_fused, 64:96 wz_tc, 96 bz_fused
    out_ref,    # (TB, F_FLAT)
):
    f32 = jnp.float32

    # ---- unpack the small packed constants (static, aligned slices)
    b1   = vec_ref[0:1, :]                 # (1, 128)
    b2   = vec_ref[1:2, 0:DIM_H2]          # (1, 64)
    freq = vec_ref[2:3, 0:DIM_T]           # (1, 32)  lane-interleaved [f0,f0,f1,f1,...]

    ct = ct_ref[...]                       # (TB, 8) f32

    # ---- cond_emb: Linear -> SiLU -> Linear -> SiLU -> LayerNorm (affine folded)
    # w1 is padded with zero rows for the t / pad lanes, so ct @ w1p == c @ w1.
    h = jnp.dot(ct, w1_ref[...], preferred_element_type=f32) + b1
    h = h * jax.nn.sigmoid(h)                                # SiLU
    h = jnp.dot(h, w2_ref[...], preferred_element_type=f32) + b2
    h = h * jax.nn.sigmoid(h)                                # SiLU
    mu = jnp.mean(h, axis=-1, keepdims=True)
    var = jnp.mean((h - mu) * (h - mu), axis=-1, keepdims=True)
    h_norm = (h - mu) * jax.lax.rsqrt(var + LN_EPS)          # (TB, 64)

    # ---- time_emb: one K=32 matmul with lane-interleaved sin/cos
    t = ct[:, DIM_C:DIM_C + 1]                               # (TB, 1)
    ang = t * freq                                           # (TB, 32)
    lane = jax.lax.broadcasted_iota(jnp.int32, ang.shape, 1)
    trig = jnp.where(lane % 2 == 0, jnp.sin(ang), jnp.cos(ang))   # (TB, 32)

    # ---- backbone network  x_out = model(x_in, z_in)
    # TODO(synk): the external `network` backbone is not provided; using a
    # deterministic linear conditioning stand-in  x_out = x + z @ Wz + bz.
    # The LN-affine/w3/b3/wz_c chain is pre-folded into w_fused / bz_fused.
    w_fused = wbig_ref[0:DIM_H2, :]                          # (64, F)
    wz_tc   = wbig_ref[DIM_H2:DIM_H2 + DIM_T, :]             # (32, F)
    bzf     = wbig_ref[DIM_H2 + DIM_T:DIM_H2 + DIM_T + 1, :] # (1, F)

    x = x_ref[...].astype(f32)
    x_out = (
        x
        + jnp.dot(h_norm, w_fused, preferred_element_type=f32)
        + jnp.dot(trig, wz_tc, preferred_element_type=f32)
        + bzf
    )

    # diff_model == 'rescaled'  =>  no residual add (res_conn branch skipped).
    out_ref[...] = x_out.astype(out_ref.dtype)


# ---------------------------------------------------------------------------
# Wrapper
# ---------------------------------------------------------------------------
@partial(jax.jit, static_argnames=("stream_bf16",))
def diffusion_forward(x_in, c_in, t_in, packed, *, stream_bf16=False):
    """packed = pack_params(raw_params).  stream_bf16 halves HBM traffic."""
    B = x_in.shape[0]
    stream_dtype = jnp.bfloat16 if stream_bf16 else jnp.float32

    x_flat = x_in.reshape(B, F_FLAT).astype(stream_dtype)
    t_col = t_in.reshape(B, 1).astype(jnp.float32)
    ct = jnp.concatenate(
        [c_in.astype(jnp.float32), t_col,
         jnp.zeros((B, CT_W - DIM_C - 1), jnp.float32)], axis=1)        # (B, 8)

    # Pad only to a multiple of 8 (<=7 rows, and only for unaligned batches);
    # the ragged last grid block handles the rest (OOB rows are write-masked).
    Bp = _round_up(B, 8)
    if Bp != B:
        x_flat = jnp.pad(x_flat, ((0, Bp - B), (0, 0)))
        ct = jnp.pad(ct, ((0, Bp - B), (0, 0)))

    # Tile selection: big tiles to amortize per-step overhead, but >=2 tiles
    # whenever possible so v7x's two TensorCores both get work.
    n_tiles = pl.cdiv(Bp, TB_MAX)
    if Bp >= 16:
        n_tiles = max(n_tiles, 2)
    TB = min(TB_MAX, _round_up(pl.cdiv(Bp, n_tiles), 8))
    grid = (pl.cdiv(Bp, TB),)

    batch_spec = lambda lanes: pl.BlockSpec((TB, lanes), lambda i: (i, 0))
    resident = lambda shape: pl.BlockSpec(shape, lambda i: (0, 0))

    out_flat = pl.pallas_call(
        _diffusion_fwd_kernel,
        out_shape=jax.ShapeDtypeStruct((Bp, F_FLAT), stream_dtype),
        grid=grid,
        in_specs=[
            batch_spec(F_FLAT),                       # x
            batch_spec(CT_W),                         # packed c|t
            resident((8, 128)),                       # packed vectors
            resident((8, 128)),                       # w1 (zero-padded rows)
            resident((DIM_H1, DIM_H2)),               # w2
            resident((WBIG_ROWS, F_FLAT)),            # fused big weights
        ],
        out_specs=batch_spec(F_FLAT),
        compiler_params=pltpu.CompilerParams(
            dimension_semantics=("parallel",),
            vmem_limit_bytes=VMEM_LIMIT,
        ),
    )(x_flat, ct, packed["vecs"], packed["w1p"], packed["w2"], packed["wbig"])

    if Bp != B:
        out_flat = out_flat[:B]
    return out_flat.reshape(B, DIM_R, DIM_A, DIM_V)


# ---------------------------------------------------------------------------
# Parameter packing / folding (done once, outside the hot path, in float64)
# ---------------------------------------------------------------------------
def pack_params(p):
    f64 = np.float64
    w1 = np.asarray(p["w1"], f64);  b1 = np.asarray(p["b1"], f64)
    w2 = np.asarray(p["w2"], f64);  b2 = np.asarray(p["b2"], f64)
    w3 = np.asarray(p["w3"], f64);  b3 = np.asarray(p["b3"], f64)
    ln_g = np.asarray(p["ln_g"], f64); ln_b = np.asarray(p["ln_b"], f64)
    wz = np.asarray(p["wz"], f64);  bz = np.asarray(p["bz"], f64)
    freq = np.asarray(p["freq"], f64)

    wz_c = wz[0:DIM_T]                              # (32, F) rows hit by c0
    wz_sin = wz[DIM_T:DIM_T + HALF_DIM]             # (16, F) rows hit by sin
    wz_cos = wz[DIM_T + HALF_DIM:2 * DIM_T]         # (16, F) rows hit by cos

    # Fold: (h_norm * ln_g + ln_b) @ w3 + b3) @ wz_c == h_norm @ W_fused + bias
    w_fused = (ln_g.reshape(-1, 1) * w3) @ wz_c                 # (64, F)
    bz_fused = bz + (ln_b @ w3 + b3) @ wz_c                     # (1, F)

    # Interleave sin/cos weight rows: row 2j = wz_sin[j], row 2j+1 = wz_cos[j]
    wz_tc = np.empty((DIM_T, F_FLAT), f64)
    wz_tc[0::2] = wz_sin
    wz_tc[1::2] = wz_cos

    wbig = np.zeros((WBIG_ROWS, F_FLAT), f64)
    wbig[0:DIM_H2] = w_fused
    wbig[DIM_H2:DIM_H2 + DIM_T] = wz_tc
    wbig[DIM_H2 + DIM_T] = bz_fused[0]

    vecs = np.zeros((8, 128), f64)
    vecs[0, :DIM_H1] = b1[0]
    vecs[1, :DIM_H2] = b2[0]
    vecs[2, :DIM_T] = np.repeat(freq[0], 2)        # lane-interleaved freq

    w1p = np.zeros((8, 128), f64)                  # zero rows for t / pad lanes
    w1p[:DIM_C] = w1

    return dict(
        vecs=jnp.asarray(vecs, jnp.float32),
        w1p=jnp.asarray(w1p, jnp.float32),
        w2=jnp.asarray(w2, jnp.float32),
        wbig=jnp.asarray(wbig, jnp.float32),
    )


# ---------------------------------------------------------------------------
# Pure-JAX reference (for correctness check) — uses the unfused raw weights
# ---------------------------------------------------------------------------
def diffusion_forward_ref(x_in, c_in, t_in, params):
    B = x_in.shape[0]
    x_flat = x_in.reshape(B, F_FLAT).astype(jnp.float32)
    h = c_in @ params["w1"] + params["b1"]
    h = h * jax.nn.sigmoid(h)
    h = h @ params["w2"] + params["b2"]
    h = h * jax.nn.sigmoid(h)
    mu = h.mean(-1, keepdims=True)
    var = ((h - mu) ** 2).mean(-1, keepdims=True)
    h = (h - mu) / jnp.sqrt(var + LN_EPS) * params["ln_g"] + params["ln_b"]
    c0 = h @ params["w3"] + params["b3"]
    ang = t_in.reshape(B, 1).astype(jnp.float32) * params["freq"]
    t0 = jnp.concatenate([jnp.sin(ang), jnp.cos(ang)], axis=-1)
    z = jnp.concatenate([c0, t0], axis=-1)
    x_out = x_flat + z @ params["wz"] + params["bz"]
    return x_out.reshape(B, DIM_R, DIM_A, DIM_V)


# ---------------------------------------------------------------------------
# Deterministic parameter / input construction
# ---------------------------------------------------------------------------
def make_params(key):
    ks = jax.random.split(key, 8)

    def lin(k, fan_in, fan_out):
        scale = 1.0 / math.sqrt(fan_in)
        w = jax.random.uniform(k, (fan_in, fan_out), jnp.float32, -scale, scale)
        b = jnp.zeros((1, fan_out), jnp.float32)
        return w, b

    w1, b1 = lin(ks[0], DIM_C, DIM_H1)
    w2, b2 = lin(ks[1], DIM_H1, DIM_H2)
    w3, b3 = lin(ks[2], DIM_H2, DIM_T)
    wz, bz = lin(ks[3], 2 * DIM_T, F_FLAT)

    # Position_Embeddings buffer: exp(arange(half) * -(log(10000)/(half-1)))
    emb_scale = math.log(10000.0) / (HALF_DIM - 1)
    freq = jnp.exp(jnp.arange(HALF_DIM, dtype=jnp.float32) * -emb_scale)[None, :]

    return dict(
        w1=w1, b1=b1, w2=w2, b2=b2,
        ln_g=jnp.ones((1, DIM_H2), jnp.float32), ln_b=jnp.zeros((1, DIM_H2), jnp.float32),
        w3=w3, b3=b3, wz=wz, bz=bz, freq=freq,
    )


if __name__ == "__main__":
    key = jax.random.PRNGKey(0)
    k_p, k_x, k_c, k_x2, k_c2 = jax.random.split(key, 5)

    raw_params = make_params(k_p)
    packed_params = pack_params(raw_params)

    # --- canonical small test (single tile) ---
    B = 2
    x_in = jax.random.normal(k_x, (B, DIM_R, DIM_A, DIM_V), jnp.float32)
    c_in = jax.random.normal(k_c, (B, DIM_C), jnp.float32)
    t_in = jnp.array([7, 123], dtype=jnp.int32)   # integer diffusion timesteps

    out = jax.block_until_ready(diffusion_forward(x_in, c_in, t_in, packed_params))
    ref = diffusion_forward_ref(x_in, c_in, t_in, raw_params)
    assert out.shape == (B, DIM_R, DIM_A, DIM_V)
    assert jnp.allclose(out, ref, atol=1e-4, rtol=1e-4), "mismatch vs JAX reference (f32)"

    # --- multi-tile + ragged last block (B=20 -> 2 tiles of 16, last ragged) ---
    B2 = 20
    x2 = jax.random.normal(k_x2, (B2, DIM_R, DIM_A, DIM_V), jnp.float32)
    c2 = jax.random.normal(k_c2, (B2, DIM_C), jnp.float32)
    t2 = jnp.arange(B2, dtype=jnp.int32)
    out2 = jax.block_until_ready(diffusion_forward(x2, c2, t2, packed_params))
    ref2 = diffusion_forward_ref(x2, c2, t2, raw_params)
    assert jnp.allclose(out2, ref2, atol=1e-4, rtol=1e-4), "mismatch vs JAX reference (multi-tile)"

    # --- optional bf16 streaming mode (looser tolerance) ---
    out_bf = jax.block_until_ready(
        diffusion_forward(x_in, c_in, t_in, packed_params, stream_bf16=True))
    assert jnp.allclose(out_bf.astype(jnp.float32), ref, atol=8e-2, rtol=8e-2), \
        "mismatch vs JAX reference (bf16 streaming)"

    print("KERNEL_OK")
</pallas_src>

<mosaic_0001>
module attributes {stable_mosaic.version = 11 : i64} {
  func.func @_diffusion_fwd_kernel(%arg0: i32, %arg1: memref<8x512xf32, #tpu.memory_space<vmem>>, %arg2: memref<8x8xf32, #tpu.memory_space<vmem>>, %arg3: memref<8x128xf32, #tpu.memory_space<vmem>>, %arg4: memref<8x128xf32, #tpu.memory_space<vmem>>, %arg5: memref<128x64xf32, #tpu.memory_space<vmem>>, %arg6: memref<104x512xf32, #tpu.memory_space<vmem>>, %arg7: memref<8x512xf32, #tpu.memory_space<vmem>>) attributes {dimension_semantics = [#tpu.dimension_semantics<parallel>], iteration_bounds = array<i64: 1>, scalar_prefetch = 0 : i64, scratch_operands = 0 : i64, tpu.core_type = #tpu.core_type<tc>, window_params = [{transform_indices = @transform_0, window_bounds = array<i64: 8, 512>}, {transform_indices = @transform_1, window_bounds = array<i64: 8, 8>}, {pipeline_mode = #tpu.pipeline_mode<synchronous>, transform_indices = @transform_2, window_bounds = array<i64: 8, 128>}, {pipeline_mode = #tpu.pipeline_mode<synchronous>, transform_indices = @transform_3, window_bounds = array<i64: 8, 128>}, {pipeline_mode = #tpu.pipeline_mode<synchronous>, transform_indices = @transform_4, window_bounds = array<i64: 128, 64>}, {pipeline_mode = #tpu.pipeline_mode<synchronous>, transform_indices = @transform_5, window_bounds = array<i64: 104, 512>}, {transform_indices = @transform_6, window_bounds = array<i64: 8, 512>}]} {
    %c0 = arith.constant 0 : index
    %c0_0 = arith.constant 0 : index
    %0 = vector.load %arg3[%c0, %c0_0] : memref<8x128xf32, #tpu.memory_space<vmem>>, vector<1x128xf32>
    %c1 = arith.constant 1 : index
    %c0_1 = arith.constant 0 : index
    %1 = vector.load %arg3[%c1, %c0_1] : memref<8x128xf32, #tpu.memory_space<vmem>>, vector<1x64xf32>
    %c2 = arith.constant 2 : index
    %c0_2 = arith.constant 0 : index
    %2 = vector.load %arg3[%c2, %c0_2] : memref<8x128xf32, #tpu.memory_space<vmem>>, vector<1x32xf32>
    %c0_3 = arith.constant 0 : index
    %c0_4 = arith.constant 0 : index
    %3 = vector.load %arg2[%c0_3, %c0_4] : memref<8x8xf32, #tpu.memory_space<vmem>>, vector<8x8xf32>
    %c0_5 = arith.constant 0 : index
    %c0_6 = arith.constant 0 : index
    %4 = vector.load %arg4[%c0_5, %c0_6] : memref<8x128xf32, #tpu.memory_space<vmem>>, vector<8x128xf32>
    %cst = arith.constant dense<0.000000e+00> : vector<8x128xf32>
    %5 = tpu.matmul %3, %4, %cst {dimension_numbers = #tpu.dot_dimension_numbers<[1], [0], [0], [1], [0, 0, 1, 1], [], []>} : vector<8x8xf32>, vector<8x128xf32>, vector<8x128xf32> -> vector<8x128xf32>
    %6 = vector.broadcast %0 : vector<1x128xf32> to vector<8x128xf32>
    %7 = arith.addf %5, %6 : vector<8x128xf32>
    %8 = arith.negf %7 : vector<8x128xf32>
    %9 = math.exp %8 : vector<8x128xf32>
    %cst_7 = arith.constant 1.000000e+00 : f32
    %10 = vector.broadcast %cst_7 : f32 to vector<8x128xf32>
    %11 = arith.addf %10, %9 : vector<8x128xf32>
    %12 = arith.divf %10, %11 : vector<8x128xf32>
    %13 = arith.mulf %7, %12 : vector<8x128xf32>
    %c0_8 = arith.constant 0 : index
    %c0_9 = arith.constant 0 : index
    %14 = vector.load %arg5[%c0_8, %c0_9] : memref<128x64xf32, #tpu.memory_space<vmem>>, vector<128x64xf32>
    %cst_10 = arith.constant dense<0.000000e+00> : vector<8x64xf32>
    %15 = tpu.matmul %13, %14, %cst_10 {dimension_numbers = #tpu.dot_dimension_numbers<[1], [0], [0], [1], [0, 0, 1, 1], [], []>} : vector<8x128xf32>, vector<128x64xf32>, vector<8x64xf32> -> vector<8x64xf32>
    %16 = vector.broadcast %1 : vector<1x64xf32> to vector<8x64xf32>
    %17 = arith.addf %15, %16 : vector<8x64xf32>
    %18 = arith.negf %17 : vector<8x64xf32>
    %19 = math.exp %18 : vector<8x64xf32>
    %cst_11 = arith.constant 1.000000e+00 : f32
    %20 = vector.broadcast %cst_11 : f32 to vector<8x64xf32>
    %21 = arith.addf %20, %19 : vector<8x64xf32>
    %22 = arith.divf %20, %21 : vector<8x64xf32>
    %23 = arith.mulf %17, %22 : vector<8x64xf32>
    %cst_12 = arith.constant dense<0.000000e+00> : vector<8xf32>
    %24 = vector.multi_reduction <add>, %23, %cst_12 [1] : vector<8x64xf32> to vector<8xf32>
    %25 = vector.shape_cast %24 : vector<8xf32> to vector<8x1xf32>
    %cst_13 = arith.constant 6.400000e+01 : f32
    %26 = vector.broadcast %cst_13 : f32 to vector<8x1xf32>
    %27 = arith.divf %25, %26 : vector<8x1xf32>
    %28 = vector.broadcast %27 : vector<8x1xf32> to vector<8x64xf32>
    %29 = arith.subf %23, %28 : vector<8x64xf32>
    %30 = vector.broadcast %27 : vector<8x1xf32> to vector<8x64xf32>
    %31 = arith.subf %23, %30 : vector<8x64xf32>
    %32 = arith.mulf %29, %31 : vector<8x64xf32>
    %cst_14 = arith.constant dense<0.000000e+00> : vector<8xf32>
    %33 = vector.multi_reduction <add>, %32, %cst_14 [1] : vector<8x64xf32> to vector<8xf32>
    %34 = vector.shape_cast %33 : vector<8xf32> to vector<8x1xf32>
    %cst_15 = arith.constant 6.400000e+01 : f32
    %35 = vector.broadcast %cst_15 : f32 to vector<8x1xf32>
    %36 = arith.divf %34, %35 : vector<8x1xf32>
    %37 = vector.broadcast %27 : vector<8x1xf32> to vector<8x64xf32>
    %38 = arith.subf %23, %37 : vector<8x64xf32>
    %cst_16 = arith.constant 9.99999974E-6 : f32
    %39 = vector.broadcast %cst_16 : f32 to vector<8x1xf32>
    %40 = arith.addf %36, %39 : vector<8x1xf32>
    %41 = math.rsqrt %40 : vector<8x1xf32>
    %42 = vector.broadcast %41 : vector<8x1xf32> to vector<8x64xf32>
    %43 = arith.mulf %38, %42 : vector<8x64xf32>
    %44 = vector.extract_strided_slice %3 {offsets = [0, 4], sizes = [8, 1], strides = [1, 1]} : vector<8x8xf32> to vector<8x1xf32>
    %45 = vector.broadcast %44 : vector<8x1xf32> to vector<8x32xf32>
    %46 = vector.broadcast %2 : vector<1x32xf32> to vector<8x32xf32>
    %47 = arith.mulf %45, %46 : vector<8x32xf32>
    %48 = tpu.iota {dimensions = array<i32: 1>} : vector<8x32xi32>
    %c2_i32 = arith.constant 2 : i32
    %c0_i32 = arith.constant 0 : i32
    %49 = arith.cmpi eq, %c2_i32, %c0_i32 : i32
    %c1_i32 = arith.constant 1 : i32
    %50 = arith.select %49, %c1_i32, %c2_i32 : i32
    %51 = vector.broadcast %50 : i32 to vector<8x32xi32>
    %52 = arith.remsi %48, %51 : vector<8x32xi32>
    %c0_i32_17 = arith.constant 0 : i32
    %53 = vector.broadcast %c0_i32_17 : i32 to vector<8x32xi32>
    %54 = arith.cmpi ne, %52, %53 : vector<8x32xi32>
    %c0_i32_18 = arith.constant 0 : i32
    %55 = vector.broadcast %c0_i32_18 : i32 to vector<8x32xi32>
    %56 = arith.cmpi slt, %52, %55 : vector<8x32xi32>
    %c0_i32_19 = arith.constant 0 : i32
    %57 = arith.cmpi slt, %50, %c0_i32_19 : i32
    %58 = vector.broadcast %57 : i1 to vector<8x32xi1>
    %59 = vector.broadcast %58 : vector<8x32xi1> to vector<8x32xi1>
    %60 = arith.xori %56, %59 : vector<8x32xi1>
    %61 = arith.andi %60, %54 : vector<8x32xi1>
    %62 = vector.broadcast %50 : i32 to vector<8x32xi32>
    %63 = arith.addi %52, %62 : vector<8x32xi32>
    %64 = arith.select %61, %63, %52 : vector<8x32xi1>, vector<8x32xi32>
    %c0_i32_20 = arith.constant 0 : i32
    %65 = vector.broadcast %c0_i32_20 : i32 to vector<8x32xi32>
    %66 = arith.cmpi eq, %64, %65 : vector<8x32xi32>
    %67 = math.sin %47 : vector<8x32xf32>
    %68 = math.cos %47 : vector<8x32xf32>
    %69 = arith.select %66, %67, %68 : vector<8x32xi1>, vector<8x32xf32>
    %c0_21 = arith.constant 0 : index
    %c0_22 = arith.constant 0 : index
    %70 = vector.load %arg6[%c0_21, %c0_22] : memref<104x512xf32, #tpu.memory_space<vmem>>, vector<64x512xf32>
    %c64 = arith.constant 64 : index
    %c0_23 = arith.constant 0 : index
    %71 = vector.load %arg6[%c64, %c0_23] : memref<104x512xf32, #tpu.memory_space<vmem>>, vector<32x512xf32>
    %c96 = arith.constant 96 : index
    %c0_24 = arith.constant 0 : index
    %72 = vector.load %arg6[%c96, %c0_24] : memref<104x512xf32, #tpu.memory_space<vmem>>, vector<1x512xf32>
    %c0_25 = arith.constant 0 : index
    %c0_26 = arith.constant 0 : index
    %73 = vector.load %arg1[%c0_25, %c0_26] : memref<8x512xf32, #tpu.memory_space<vmem>>, vector<8x512xf32>
    %cst_27 = arith.constant dense<0.000000e+00> : vector<8x512xf32>
    %74 = tpu.matmul %43, %70, %cst_27 {dimension_numbers = #tpu.dot_dimension_numbers<[1], [0], [0], [1], [0, 0, 1, 1], [], []>} : vector<8x64xf32>, vector<64x512xf32>, vector<8x512xf32> -> vector<8x512xf32>
    %75 = arith.addf %73, %74 : vector<8x512xf32>
    %cst_28 = arith.constant dense<0.000000e+00> : vector<8x512xf32>
    %76 = tpu.matmul %69, %71, %cst_28 {dimension_numbers = #tpu.dot_dimension_numbers<[1], [0], [0], [1], [0, 0, 1, 1], [], []>} : vector<8x32xf32>, vector<32x512xf32>, vector<8x512xf32> -> vector<8x512xf32>
    %77 = arith.addf %75, %76 : vector<8x512xf32>
    %78 = vector.broadcast %72 : vector<1x512xf32> to vector<8x512xf32>
    %79 = arith.addf %77, %78 : vector<8x512xf32>
    %c0_29 = arith.constant 0 : index
    %c0_30 = arith.constant 0 : index
    %80 = vector.load %arg7[%c0_29, %c0_30] : memref<8x512xf32, #tpu.memory_space<vmem>>, vector<8x512xf32>
    tpu.vector_store %arg7[%c0_29, %c0_30], %79 {strides = array<i32>} : memref<8x512xf32, #tpu.memory_space<vmem>>, vector<8x512xf32>,
    return
  }
  func.func @transform_0(%arg0: i32) -> (i32, i32) {
    %c0_i32 = arith.constant 0 : i32
    %c0_i32_0 = arith.constant 0 : i32
    return %arg0, %c0_i32 : i32, i32
  }
  func.func @transform_1(%arg0: i32) -> (i32, i32) {
    %c0_i32 = arith.constant 0 : i32
    %c0_i32_0 = arith.constant 0 : i32
    return %arg0, %c0_i32 : i32, i32
  }
  func.func @transform_2(%arg0: i32) -> (i32, i32) {
    %c0_i32 = arith.constant 0 : i32
    %c0_i32_0 = arith.constant 0 : i32
    %c0_i32_1 = arith.constant 0 : i32
    return %c0_i32, %c0_i32_0 : i32, i32
  }
  func.func @transform_3(%arg0: i32) -> (i32, i32) {
    %c0_i32 = arith.constant 0 : i32
    %c0_i32_0 = arith.constant 0 : i32
    %c0_i32_1 = arith.constant 0 : i32
    return %c0_i32, %c0_i32_0 : i32, i32
  }
  func.func @transform_4(%arg0: i32) -> (i32, i32) {
    %c0_i32 = arith.constant 0 : i32
    %c0_i32_0 = arith.constant 0 : i32
    %c0_i32_1 = arith.constant 0 : i32
    return %c0_i32, %c0_i32_0 : i32, i32
  }
  func.func @transform_5(%arg0: i32) -> (i32, i32) {
    %c0_i32 = arith.constant 0 : i32
    %c0_i32_0 = arith.constant 0 : i32
    %c0_i32_1 = arith.constant 0 : i32
    return %c0_i32, %c0_i32_0 : i32, i32
  }
  func.func @transform_6(%arg0: i32) -> (i32, i32) {
    %c0_i32 = arith.constant 0 : i32
    %c0_i32_0 = arith.constant 0 : i32
    return %arg0, %c0_i32 : i32, i32
  }
}

</mosaic_0001>

<llo_original>
// kernel: diffusion_forward.1
$region0: #{diffusion_forward.1}
  #allocation0 [shape = 'u32[]', space=smem, size = 0x4, offset = 0x4, fixed_abs, tag = 'smem constant byte address 0x4 - core index']
  #allocation1 [shape = 'u32[72,128]{1,0:T(1,128)}', space=vmem, size = 0x9000, scoped, tag = 'internal scratch']
  %s0 = inlined_call_operand.vmem [shape: f32[8,512], index: 0, kind: input, shape index: {}]
  %s1 = inlined_call_operand.vmem [shape: f32[8,8], index: 1, kind: input, shape index: {}]
  %s2 = inlined_call_operand.vmem [shape: f32[8,128], index: 2, kind: input, shape index: {}]
  %s3 = inlined_call_operand.vmem [shape: f32[8,128], index: 3, kind: input, shape index: {}]
  %s4 = inlined_call_operand.vmem [shape: f32[128,64], index: 4, kind: input, shape index: {}]
  %s5 = inlined_call_operand.hbm [shape: f32[104,512], index: 5, kind: input, shape index: {}]
  %s6 = inlined_call_operand.vmem [shape: f32[8,512], index: 6, kind: output, shape index: {}]
  %s7 = sld [smem:[#allocation0]]
  $region38: #{diffusion_forward.1} parent=0
    _
  %s9 = ssub.s32 1, %s7
  %s10 = scalar_select 0, %s9, %s7
  $region1: #{diffusion_forward.1} parent=0
    #allocation2 [shape = 'u8[212992]{0}', space=vmem, size = 0x34000, scoped, tag = 'input window, operand 5, single buffered']
    #allocation3 [shape = 's32[1]{0}', space=sflag, size = 0x4, scoped, tag = 'scoped memory for diffusion_forward.1']
    %11 = vsyncpa [#allocation3], 0
    // Predicated region
    $region2: #{diffusion_forward.1} parent=1 // pred_check
      _
    $region3: #{diffusion_forward.1} parent=1 // pred_check_branch
      %13 = sbr.rel (0) target = $region5
    $region4: #{diffusion_forward.1} parent=1 // pred_region
      _
    $region5: #{diffusion_forward.1} parent=1 // pred_fallthru
      _
    // Predicated region
    $region6: #{diffusion_forward.1} parent=1 // pred_check
      _
    $region7: #{diffusion_forward.1} parent=1 // pred_check_branch
      %15 = sbr.rel (0) target = $region9
    $region8: #{diffusion_forward.1} parent=1 // pred_region
      _
    $region9: #{diffusion_forward.1} parent=1 // pred_fallthru
      _
    // Predicated region
    $region10: #{diffusion_forward.1} parent=1 // pred_check
      _
    $region11: #{diffusion_forward.1} parent=1 // pred_check_branch
      %17 = sbr.rel (0) target = $region13
    $region12: #{diffusion_forward.1} parent=1 // pred_region
      _
    $region13: #{diffusion_forward.1} parent=1 // pred_fallthru
      _
    // Predicated region
    $region14: #{diffusion_forward.1} parent=1 // pred_check
      _
    $region15: #{diffusion_forward.1} parent=1 // pred_check_branch
      %19 = sbr.rel (0) target = $region17
    $region16: #{diffusion_forward.1} parent=1 // pred_region
      _
    $region17: #{diffusion_forward.1} parent=1 // pred_fallthru
      _
    // Predicated region
    $region18: #{diffusion_forward.1} parent=1 // pred_check
      _
    $region19: #{diffusion_forward.1} parent=1 // pred_check_branch
      %21 = sbr.rel (0) target = $region21
    $region20: #{diffusion_forward.1} parent=1 // pred_region
      _
    $region21: #{diffusion_forward.1} parent=1 // pred_fallthru
      _
    // Predicated region
    $region22: #{diffusion_forward.1} parent=1 // pred_check
      _
    $region23: #{diffusion_forward.1} parent=1 // pred_check_branch
      %23 = sbr.rel (0) target = $region25
    $region24: #{diffusion_forward.1} parent=1 // pred_region
      %25 = vsyncadd [#allocation3], 0
      %s26 = sshll.u32 %s5, 4
      %s27 = int_to_ptr.hbm [resolvable:$true] %s26
      %s28 = sshll.u32 [#allocation2], 4
      %s29 = int_to_ptr.vmem [resolvable:$true] %s28
      %34 = dma.hbm_to_vmem [thread:$0]  %s27, 6656, %s29, [#allocation3], 512, 512, 32
    $region25: #{diffusion_forward.1} parent=1 // pred_fallthru
      _
    // Predicated region
    $region26: #{diffusion_forward.1} parent=1 // pred_check
      _
    $region27: #{diffusion_forward.1} parent=1 // pred_check_branch
      %36 = sbr.rel (0) target = $region29
    $region28: #{diffusion_forward.1} parent=1 // pred_region
      %38 = dma.done [#allocation3], 6656
    $region29: #{diffusion_forward.1} parent=1 // pred_fallthru
      _
    %v39 = vld [vmem:[%s2] sm:$0x1]
    %v40 = vld [vmem:[%s2 + $0x1] sm:$0x1]
    %v41 = vld [vmem:[%s2 + $0x2] sm:$0x1]
    %v42 = vld [vmem:[%s1] sm:$0xff]
    %v43 = vld [vmem:[%s3] sm:$0xff]
    %v44 = vperm.slane %v39, 0
    %vm45 = vcmask 64512
    %v47 = vsel %vm45, %v42, 0
    %49 = vmatpush.msra.mxu0 0.0
    %50 = vmatpush.msra.mxu0 0.0
    %51 = vmatpush.msra.mxu0 0.0
    %52 = vmatpush.msra.mxu0 0.0
    %53 = vmatpush.msra.mxu0 0.0
    %54 = vmatpush.msra.mxu0 0.0
    %55 = vmatpush.msra.mxu0 0.0
    %56 = vmatpush.msra.mxu0 0.0
    %57 = vmatpush.msra.mxu0 0.0
    %58 = vmatpush.msra.mxu0 0.0
    %59 = vmatpush.msra.mxu0 0.0
    %60 = vmatpush.msra.mxu0 0.0
    %61 = vmatpush.msra.mxu0 0.0
    %62 = vmatpush.msra.mxu0 0.0
    %63 = vmatpush.msra.mxu0 0.0
    %64 = vmatpush.msra.mxu0 %v43
    %65 = vmatmul.f32.gmra.mxu0 %v47
    %v66 = vpop.f32.mrf.mxu0
    %v67 = vadd.f32 %v44, %v66
    %68 = vdwg.mxu0
    %v69 = vxor.u32 %v67, 2147483648
    %v70 = vmul.f32 %v69, 1.442695
    %v71 = vpow.pop %v70
    %v72 = vadd.f32 %v71, 1.0
    %v73 = vrcp.pop %v72
    %v74 = vmul.f32 %v72, %v73
    %v75 = vsub.f32 1.0, %v74
    %v76 = vmul.f32 %v73, %v75
    %v77 = vadd.f32 %v73, %v76
    %vm78 = vweird.f32 %v72
    %vm79 = vweird.f32 %v73
    %vm80 = vmor %vm78, %vm79
    %v81 = vsel %vm80, %v73, %v77
    %v82 = vand.u32 2147483647, %v72
    %vm83 = vcmp.eq.f32.partialorder %v82, 8.507059e+37
    %v84 = vand.u32 %v72, 2147483648
    %v85 = vor.u32 1.1754944e-38, %v84
    %v86 = vsel %vm83, %v85, %v81
    %v87 = vmul.f32 1.0, %v86
    %v88 = vmul.f32 %v67, %v87
    %v89 = vld [vmem:[%s4] sm:$0xff]
    %v90 = vld [vmem:[%s4 + $0x8] sm:$0xff]
    %v91 = vld [vmem:[%s4 + $0x10] sm:$0xff]
    %v92 = vld [vmem:[%s4 + $0x18] sm:$0xff]
    %v93 = vld [vmem:[%s4 + $0x20] sm:$0xff]
    %v94 = vld [vmem:[%s4 + $0x28] sm:$0xff]
    %v95 = vld [vmem:[%s4 + $0x30] sm:$0xff]
    %v96 = vld [vmem:[%s4 + $0x38] sm:$0xff]
    %v97 = vld [vmem:[%s4 + $0x40] sm:$0xff]
    %v98 = vld [vmem:[%s4 + $0x48] sm:$0xff]
    %v99 = vld [vmem:[%s4 + $0x50] sm:$0xff]
    %v100 = vld [vmem:[%s4 + $0x58] sm:$0xff]
    %v101 = vld [vmem:[%s4 + $0x60] sm:$0xff]
    %v102 = vld [vmem:[%s4 + $0x68] sm:$0xff]
    %v103 = vld [vmem:[%s4 + $0x70] sm:$0xff]
    %v104 = vld [vmem:[%s4 + $0x78] sm:$0xff]
    %v105 = vperm.slane %v40, 0
    %106 = vmatpush.msra.mxu0 %v104
    %107 = vmatpush.msra.mxu0 %v103
    %108 = vmatpush.msra.mxu0 %v102
    %109 = vmatpush.msra.mxu0 %v101
    %110 = vmatpush.msra.mxu0 %v100
    %111 = vmatpush.msra.mxu0 %v99
    %112 = vmatpush.msra.mxu0 %v98
    %113 = vmatpush.msra.mxu0 %v97
    %114 = vmatpush.msra.mxu0 %v96
    %115 = vmatpush.msra.mxu0 %v95
    %116 = vmatpush.msra.mxu0 %v94
    %117 = vmatpush.msra.mxu0 %v93
    %118 = vmatpush.msra.mxu0 %v92
    %119 = vmatpush.msra.mxu0 %v91
    %120 = vmatpush.msra.mxu0 %v90
    %121 = vmatpush.msra.mxu0 %v89
    %122 = vmatmul.f32.gmra.mxu0 %v88
    %v123 = vpop.f32.mrf.mxu0
    %v124 = vadd.f32 %v105, %v123
    %125 = vdwg.mxu0
    %v126 = vxor.u32 %v124, 2147483648
    %v127 = vmul.f32 %v126, 1.442695
    %v128 = vpow.pop %v127
    %v129 = vadd.f32 %v128, 1.0
    %v130 = vrcp.pop %v129
    %v131 = vmul.f32 %v129, %v130
    %v132 = vsub.f32 1.0, %v131
    %v133 = vmul.f32 %v130, %v132
    %v134 = vadd.f32 %v130, %v133
    %vm135 = vweird.f32 %v129
    %vm136 = vweird.f32 %v130
    %vm137 = vmor %vm135, %vm136
    %v138 = vsel %vm137, %v130, %v134
    %v139 = vand.u32 2147483647, %v129
    %vm140 = vcmp.eq.f32.partialorder %v139, 8.507059e+37
    %v141 = vand.u32 %v129, 2147483648
    %v142 = vor.u32 1.1754944e-38, %v141
    %v143 = vsel %vm140, %v142, %v138
    %v144 = vmul.f32 1.0, %v143
    %v145 = vmul.f32 %v124, %v144
    %vm146 = vcmask 523264
    %v147 = vsel %vm146, %v145, 0.0
    %148 = vadd.xlane.f32.xlu0 %v147
    %v149 = vpop.xlane.xlu0 %148
    %v150 = vrcp.pop 64.0
    %v151 = vmul.f32 64.0, %v150
    %v152 = vsub.f32 1.0, %v151
    %v153 = vmul.f32 %v150, %v152
    %v154 = vadd.f32 %v150, %v153
    %vm155 = vweird.f32 %v150
    %v156 = vsel %vm155, %v150, %v154
    %v157 = vmul.f32 %v149, %v156
    %v158 = vsub.f32 %v145, %v157
    %v159 = vmul.f32 %v158, %v158
    %v160 = vsel %vm146, %v159, 0.0
    %161 = vadd.xlane.f32.xlu0 %v160
    %v162 = vpop.xlane.xlu0 %161
    %v163 = vmul.f32 %v162, %v156
    %v164 = vadd.f32 %v163, 1e-05
    %v165 = vrsqrt.pop %v164
    %v166 = vmul.f32 %v165, %v164
    %v167 = vmul.f32 %v166, %v165
    %v168 = vmul.f32 0.5, %v167
    %v169 = vsub.f32 1.5, %v168
    %v170 = vmul.f32 %v165, %v169
    %vm171 = vweird.f32 %v164
    %vm172 = vweird.f32 %v165
    %vm173 = vmor %vm171, %vm172
    %v174 = vsel %vm173, %v165, %v170
    %v175 = vmul.f32 %v158, %v174
    %176 = vset.pattern.permute.xlu0 4
    %177 = vperm.xlu0 %176, %v42
    %v178 = vpop.permute.xlu0 %177
    %v180 = vperm.slane %v41, 0
    %v181 = vmul.f32 %v178, %v180
    %v182 = vlaneseq
    %v183 = vand.u32 %v182, 127
    %vm184 = vcmp.lt.s32.totalorder %v183, 0
    %v185 = vsub.s32 0, %v183
    %v186 = vsel %vm184, %v185, %v183
    %v187 = vshrl.u32 %v186, 1
    %v188 = vand.u32 %v186, 1
    %v189 = vsub.s32 0, %v188
    %v190 = vsel %vm184, %v189, %v188
    %vm191 = vcmp.ne.s32.totalorder %v190, 0
    %vm192 = vcmp.lt.s32.totalorder %v190, 0
    %vm193 = vmand %vm192, %vm191
    %v194 = vadd.s32 %v190, 2
    %v195 = vsel %vm193, %v194, %v190
    %vm196 = vcmp.eq.s32.totalorder %v195, 0
    %v197 = vand.u32 2147483647, %v181
    %vm198 = vcmp.le.f32.partialorder %v197, 0.7853982
    %vm199 = vcmp.lt.s32.totalorder %v181, 0
    %v200 = vand.u32 %v181, 2139095040
    %v201 = vshrl.u32 %v200, 23
    %v202 = vsub.s32 %v201, 127
    %v203 = vand.u32 2147483647, %v181
    %v204 = vand.u32 %v203, 8388607
    %v205 = vor.u32 %v204, 8388608
    %v206 = vsub.s32 0, %v205
    %v207 = vadd.s32 %v202, 1
    %vm208 = vcmp.gt.s32.totalorder %v207, 0
    %v209 = vsel %vm208, %v207, 0
    %v210 = vshrl.u32 %v209, 5
    %v211 = vand.u32 %v209, 31
    %v212 = vsub.s32 32, %v211
    %v213 = vshrl.u32 683565275, %v212
    %v214 = vshll.u32 683565275, %v211
    %v215 = vshrl.u32 2475754826, %v212
    %v216 = vor.u32 %v214, %v215
    %v217 = vshll.u32 2475754826, %v211
    %v218 = vshrl.u32 2131351028, %v212
    %v219 = vor.u32 %v217, %v218
    %v220 = vshll.u32 2131351028, %v211
    %v221 = vshrl.u32 2102212464, %v212
    %v222 = vor.u32 %v220, %v221
    %v223 = vshll.u32 2102212464, %v211
    %v224 = vshrl.u32 920167782, %v212
    %v225 = vor.u32 %v223, %v224
    %v226 = vshll.u32 920167782, %v211
    %v227 = vshrl.u32 1326507024, %v212
    %v228 = vor.u32 %v226, %v227
    %vm229 = vcmp.lt.s32.totalorder %v210, 1
    %vm230 = vcmp.lt.s32.totalorder %v210, 2
    %vm231 = vcmp.lt.s32.totalorder %v210, 3
    %vm232 = vcmp.lt.s32.totalorder %v210, 4
    %v233 = vsel %vm229, %v213, %v216
    %v234 = vsel %vm232, %v222, 2102212464
    %v235 = vsel %vm231, %v219, %v234
    %v236 = vsel %vm230, %v233, %v235
    %v237 = vsel %vm229, %v216, %v219
    %v238 = vsel %vm232, %v225, 920167782
    %v239 = vsel %vm231, %v222, %v238
    %v240 = vsel %vm230, %v237, %v239
    %v241 = vsel %vm229, %v219, %v222
    %v242 = vsel %vm232, %v228, 1326507024
    %v243 = vsel %vm231, %v225, %v242
    %v244 = vsel %vm230, %v241, %v243
    %v245 = vshll.u32 %v205, 8
    %v246 = vand.u32 %v245, 65535
    %v247 = vshrl.u32 %v245, 16
    %v248 = vand.u32 %v244, 65535
    %v249 = vshrl.u32 %v244, 16
    %v250 = vmul.u32 %v246, %v248
    %v251 = vmul.u32 %v246, %v249
    %v252 = vmul.u32 %v247, %v248
    %v253 = vmul.u32 %v247, %v249
    %v254 = vshll.u32 %v251, 16
    %v255 = vshrl.u32 %v251, 16
    %v256 = vshll.u32 %v252, 16
    %v257 = vshrl.u32 %v252, 16
    %vm258 = vc.u32 %v250, %v254
    %v259 = vsel %vm258, 1, 0
    %v260 = vadd.s32 %v250, %v254
    %v261 = vadd.s32 %v253, %v259
    %vm262 = vc.u32 %v260, %v256
    %v263 = vsel %vm262, 1, 0
    %v264 = vadd.s32 %v260, %v256
    %v265 = vadd.s32 %v261, %v263
    %v266 = vadd.s32 %v265, %v255
    %v267 = vadd.s32 %v266, %v257
    %v268 = vand.u32 %v245, 65535
    %v269 = vshrl.u32 %v245, 16
    %v270 = vand.u32 %v240, 65535
    %v271 = vshrl.u32 %v240, 16
    %v272 = vmul.u32 %v268, %v270
    %v273 = vmul.u32 %v268, %v271
    %v274 = vmul.u32 %v269, %v270
    %v275 = vmul.u32 %v269, %v271
    %v276 = vshll.u32 %v273, 16
    %v277 = vshrl.u32 %v273, 16
    %v278 = vshll.u32 %v274, 16
    %v279 = vshrl.u32 %v274, 16
    %vm280 = vc.u32 %v272, %v276
    %v281 = vsel %vm280, 1, 0
    %v282 = vadd.s32 %v272, %v276
    %v283 = vadd.s32 %v275, %v281
    %vm284 = vc.u32 %v282, %v278
    %v285 = vsel %vm284, 1, 0
    %v286 = vadd.s32 %v282, %v278
    %v287 = vadd.s32 %v283, %v285
    %v288 = vadd.s32 %v287, %v277
    %v289 = vadd.s32 %v288, %v279
    %v290 = vmul.u32 %v245, %v236
    %v291 = vadd.s32 %v267, %v286
    %vm292 = vc.u32 %v267, %v286
    %v293 = vadd.s32 %v289, 1
    %v294 = vsel %vm292, %v293, %v289
    %v295 = vadd.s32 %v290, %v294
    %v296 = vadd.s32 %v295, 536870912
    %v297 = vshrl.u32 %v296, 30
    %v298 = vshll.u32 %v297, 30
    %v299 = vsub.s32 %v295, %v298
    %vm300 = vcmp.lt.s32.totalorder %v299, 0
    %v301 = vsub.s32 0, %v299
    %v302 = vsel %vm300, %v301, %v299
    %v303 = vclz %v302
    %v304 = vsub.s32 %v303, 2
    %vm305 = vcmp.gt.s32.totalorder 0, %v304
    %v306 = vsel %vm305, 0, %v304
    %v307 = vsub.s32 32, %v306
    %v308 = vshll.u32 %v299, %v306
    %v309 = vshrl.u32 %v291, %v307
    %v310 = vor.u32 %v308, %v309
    %v311 = vsub.s32 4294967266, %v306
    %v312 = vadd.s32 %v311, 127
    %v313 = vshll.u32 %v312, 23
    %v314 = vor.u32 4788187, %v313
    %v315 = vand.u32 2147483647, %v314
    %v317 = vcvt.s32.f32 %v310
    %v318 = vmul.f32 %v317, %v315
    %v319 = vxor.u32 %v318, 2147483648
    %v320 = vsel %vm199, %v319, %v318
    %v321 = vsub.s32 4, %v297
    %v322 = vsel %vm199, %v321, %v297
    %v323 = vsel %vm198, %v181, %v320
    %v324 = vsel %vm198, 0, %v322
    %v325 = vmul.f32 %v323, %v323
    %v326 = vmul.f32 %v325, -0.001358992
    %v327 = vadd.f32 %v326, 0.041655596
    %v328 = vmul.f32 %v325, %v327
    %v329 = vadd.f32 %v328, -0.4999988
    %v330 = vmul.f32 %v325, %v329
    %v331 = vadd.f32 1.0, %v330
    %v332 = vmul.f32 %v323, %v323
    %v333 = vmul.f32 %v332, -0.00019511016
    %v334 = vadd.f32 %v333, 0.008332121
    %v335 = vmul.f32 %v332, %v334
    %v336 = vadd.f32 %v335, -0.16666654
    %v337 = vmul.f32 %v332, %v336
    %v338 = vadd.f32 %v337, 1.0
    %v339 = vmul.f32 %v338, %v323
    %vm340 = vweird.f32 %v181
    %v341 = vadd.s32 %v324, 3
    %v342 = vand.u32 %v341, 3
    %vm343 = vcmp.lt.s32.totalorder %v342, 2
    %vm344 = vcmp.eq.s32.totalorder %v342, 0
    %v345 = vxor.u32 %v339, 2147483648
    %v346 = vsel %vm344, %v331, %v345
    %vm347 = vcmp.eq.s32.totalorder %v342, 2
    %v348 = vxor.u32 %v331, 2147483648
    %v349 = vsel %vm347, %v348, %v339
    %v350 = vsel %vm343, %v346, %v349
    %v351 = vsel %vm340, nan, %v350
    %v352 = vand.u32 2147483647, %v181
    %vm353 = vcmp.le.f32.partialorder %v352, 0.7853982
    %vm354 = vcmp.lt.s32.totalorder %v181, 0
    %v355 = vand.u32 %v181, 2139095040
    %v356 = vshrl.u32 %v355, 23
    %v357 = vsub.s32 %v356, 127
    %v358 = vand.u32 2147483647, %v181
    %v359 = vand.u32 %v358, 8388607
    %v360 = vor.u32 %v359, 8388608
    %v361 = vsub.s32 0, %v360
    %v362 = vadd.s32 %v357, 1
    %vm363 = vcmp.gt.s32.totalorder %v362, 0
    %v364 = vsel %vm363, %v362, 0
    %v365 = vshrl.u32 %v364, 5
    %v366 = vand.u32 %v364, 31
    %v367 = vsub.s32 32, %v366
    %v368 = vshrl.u32 683565275, %v367
    %v369 = vshll.u32 683565275, %v366
    %v370 = vshrl.u32 2475754826, %v367
    %v371 = vor.u32 %v369, %v370
    %v372 = vshll.u32 2475754826, %v366
    %v373 = vshrl.u32 2131351028, %v367
    %v374 = vor.u32 %v372, %v373
    %v375 = vshll.u32 2131351028, %v366
    %v376 = vshrl.u32 2102212464, %v367
    %v377 = vor.u32 %v375, %v376
    %v378 = vshll.u32 2102212464, %v366
    %v379 = vshrl.u32 920167782, %v367
    %v380 = vor.u32 %v378, %v379
    %v381 = vshll.u32 920167782, %v366
    %v382 = vshrl.u32 1326507024, %v367
    %v383 = vor.u32 %v381, %v382
    %vm384 = vcmp.lt.s32.totalorder %v365, 1
    %vm385 = vcmp.lt.s32.totalorder %v365, 2
    %vm386 = vcmp.lt.s32.totalorder %v365, 3
    %vm387 = vcmp.lt.s32.totalorder %v365, 4
    %v388 = vsel %vm384, %v368, %v371
    %v389 = vsel %vm387, %v377, 2102212464
    %v390 = vsel %vm386, %v374, %v389
    %v391 = vsel %vm385, %v388, %v390
    %v392 = vsel %vm384, %v371, %v374
    %v393 = vsel %vm387, %v380, 920167782
    %v394 = vsel %vm386, %v377, %v393
    %v395 = vsel %vm385, %v392, %v394
    %v396 = vsel %vm384, %v374, %v377
    %v397 = vsel %vm387, %v383, 1326507024
    %v398 = vsel %vm386, %v380, %v397
    %v399 = vsel %vm385, %v396, %v398
    %v400 = vshll.u32 %v360, 8
    %v401 = vand.u32 %v400, 65535
    %v402 = vshrl.u32 %v400, 16
    %v403 = vand.u32 %v399, 65535
    %v404 = vshrl.u32 %v399, 16
    %v405 = vmul.u32 %v401, %v403
    %v406 = vmul.u32 %v401, %v404
    %v407 = vmul.u32 %v402, %v403
    %v408 = vmul.u32 %v402, %v404
    %v409 = vshll.u32 %v406, 16
    %v410 = vshrl.u32 %v406, 16
    %v411 = vshll.u32 %v407, 16
    %v412 = vshrl.u32 %v407, 16
    %vm413 = vc.u32 %v405, %v409
    %v414 = vsel %vm413, 1, 0
    %v415 = vadd.s32 %v405, %v409
    %v416 = vadd.s32 %v408, %v414
    %vm417 = vc.u32 %v415, %v411
    %v418 = vsel %vm417, 1, 0
    %v419 = vadd.s32 %v415, %v411
    %v420 = vadd.s32 %v416, %v418
    %v421 = vadd.s32 %v420, %v410
    %v422 = vadd.s32 %v421, %v412
    %v423 = vand.u32 %v400, 65535
    %v424 = vshrl.u32 %v400, 16
    %v425 = vand.u32 %v395, 65535
    %v426 = vshrl.u32 %v395, 16
    %v427 = vmul.u32 %v423, %v425
    %v428 = vmul.u32 %v423, %v426
    %v429 = vmul.u32 %v424, %v425
    %v430 = vmul.u32 %v424, %v426
    %v431 = vshll.u32 %v428, 16
    %v432 = vshrl.u32 %v428, 16
    %v433 = vshll.u32 %v429, 16
    %v434 = vshrl.u32 %v429, 16
    %vm435 = vc.u32 %v427, %v431
    %v436 = vsel %vm435, 1, 0
    %v437 = vadd.s32 %v427, %v431
    %v438 = vadd.s32 %v430, %v436
    %vm439 = vc.u32 %v437, %v433
    %v440 = vsel %vm439, 1, 0
    %v441 = vadd.s32 %v437, %v433
    %v442 = vadd.s32 %v438, %v440
    %v443 = vadd.s32 %v442, %v432
    %v444 = vadd.s32 %v443, %v434
    %v445 = vmul.u32 %v400, %v391
    %v446 = vadd.s32 %v422, %v441
    %vm447 = vc.u32 %v422, %v441
    %v448 = vadd.s32 %v444, 1
    %v449 = vsel %vm447, %v448, %v444
    %v450 = vadd.s32 %v445, %v449
    %v451 = vadd.s32 %v450, 536870912
    %v452 = vshrl.u32 %v451, 30
    %v453 = vshll.u32 %v452, 30
    %v454 = vsub.s32 %v450, %v453
    %vm455 = vcmp.lt.s32.totalorder %v454, 0
    %v456 = vsub.s32 0, %v454
    %v457 = vsel %vm455, %v456, %v454
    %v458 = vclz %v457
    %v459 = vsub.s32 %v458, 2
    %vm460 = vcmp.gt.s32.totalorder 0, %v459
    %v461 = vsel %vm460, 0, %v459
    %v462 = vsub.s32 32, %v461
    %v463 = vshll.u32 %v454, %v461
    %v464 = vshrl.u32 %v446, %v462
    %v465 = vor.u32 %v463, %v464
    %v466 = vsub.s32 4294967266, %v461
    %v467 = vadd.s32 %v466, 127
    %v468 = vshll.u32 %v467, 23
    %v469 = vor.u32 4788187, %v468
    %v470 = vand.u32 2147483647, %v469
    %v472 = vcvt.s32.f32 %v465
    %v473 = vmul.f32 %v472, %v470
    %v474 = vxor.u32 %v473, 2147483648
    %v475 = vsel %vm354, %v474, %v473
    %v476 = vsub.s32 4, %v452
    %v477 = vsel %vm354, %v476, %v452
    %v478 = vsel %vm353, %v181, %v475
    %v479 = vsel %vm353, 0, %v477
    %v480 = vmul.f32 %v478, %v478
    %v481 = vmul.f32 %v480, -0.001358992
    %v482 = vadd.f32 %v481, 0.041655596
    %v483 = vmul.f32 %v480, %v482
    %v484 = vadd.f32 %v483, -0.4999988
    %v485 = vmul.f32 %v480, %v484
    %v486 = vadd.f32 1.0, %v485
    %v487 = vmul.f32 %v478, %v478
    %v488 = vmul.f32 %v487, -0.00019511016
    %v489 = vadd.f32 %v488, 0.008332121
    %v490 = vmul.f32 %v487, %v489
    %v491 = vadd.f32 %v490, -0.16666654
    %v492 = vmul.f32 %v487, %v491
    %v493 = vadd.f32 %v492, 1.0
    %v494 = vmul.f32 %v493, %v478
    %vm495 = vweird.f32 %v181
    %v496 = vand.u32 %v479, 3
    %vm497 = vcmp.lt.s32.totalorder %v496, 2
    %vm498 = vcmp.eq.s32.totalorder %v496, 0
    %v499 = vxor.u32 %v494, 2147483648
    %v500 = vsel %vm498, %v486, %v499
    %vm501 = vcmp.eq.s32.totalorder %v496, 2
    %v502 = vxor.u32 %v486, 2147483648
    %v503 = vsel %vm501, %v502, %v494
    %v504 = vsel %vm497, %v500, %v503
    %v505 = vsel %vm495, nan, %v504
    %v506 = vsel %vm196, %v351, %v505
    %v507 = vld [vmem:[#allocation2] sm:$0xff]
    %v508 = vld [vmem:[#allocation2 + $0x8] sm:$0xff]
    %v509 = vld [vmem:[#allocation2 + $0x10] sm:$0xff]
    %v510 = vld [vmem:[#allocation2 + $0x18] sm:$0xff]
    %v511 = vld [vmem:[#allocation2 + $0x20] sm:$0xff]
    %v512 = vld [vmem:[#allocation2 + $0x28] sm:$0xff]
    %v513 = vld [vmem:[#allocation2 + $0x30] sm:$0xff]
    %v514 = vld [vmem:[#allocation2 + $0x38] sm:$0xff]
    %v515 = vld [vmem:[#allocation2 + $0x40] sm:$0xff]
    %v516 = vld [vmem:[#allocation2 + $0x48] sm:$0xff]
    %v517 = vld [vmem:[#allocation2 + $0x50] sm:$0xff]
    %v518 = vld [vmem:[#allocation2 + $0x58] sm:$0xff]
    %v519 = vld [vmem:[#allocation2 + $0x60] sm:$0xff]
    %v520 = vld [vmem:[#allocation2 + $0x68] sm:$0xff]
    %v521 = vld [vmem:[#allocation2 + $0x70] sm:$0xff]
    %v522 = vld [vmem:[#allocation2 + $0x78] sm:$0xff]
    %v523 = vld [vmem:[#allocation2 + $0x80] sm:$0xff]
    %v524 = vld [vmem:[#allocation2 + $0x88] sm:$0xff]
    %v525 = vld [vmem:[#allocation2 + $0x90] sm:$0xff]
    %v526 = vld [vmem:[#allocation2 + $0x98] sm:$0xff]
    %v527 = vld [vmem:[#allocation2 + $0xa0] sm:$0xff]
    %v528 = vld [vmem:[#allocation2 + $0xa8] sm:$0xff]
    %v529 = vld [vmem:[#allocation2 + $0xb0] sm:$0xff]
    %v530 = vld [vmem:[#allocation2 + $0xb8] sm:$0xff]
    %v531 = vld [vmem:[#allocation2 + $0xc0] sm:$0xff]
    %v532 = vld [vmem:[#allocation2 + $0xc8] sm:$0xff]
    %v533 = vld [vmem:[#allocation2 + $0xd0] sm:$0xff]
    %v534 = vld [vmem:[#allocation2 + $0xd8] sm:$0xff]
    %v535 = vld [vmem:[#allocation2 + $0xe0] sm:$0xff]
    %v536 = vld [vmem:[#allocation2 + $0xe8] sm:$0xff]
    %v537 = vld [vmem:[#allocation2 + $0xf0] sm:$0xff]
    %v538 = vld [vmem:[#allocation2 + $0xf8] sm:$0xff]
    %v539 = vld [vmem:[#allocation2 + $0x100] sm:$0xff]
    %v540 = vld [vmem:[#allocation2 + $0x108] sm:$0xff]
    %v541 = vld [vmem:[#allocation2 + $0x110] sm:$0xff]
    %v542 = vld [vmem:[#allocation2 + $0x118] sm:$0xff]
    %v543 = vld [vmem:[#allocation2 + $0x120] sm:$0xff]
    %v544 = vld [vmem:[#allocation2 + $0x128] sm:$0xff]
    %v545 = vld [vmem:[#allocation2 + $0x130] sm:$0xff]
    %v546 = vld [vmem:[#allocation2 + $0x138] sm:$0xff]
    %v547 = vld [vmem:[#allocation2 + $0x140] sm:$0xff]
    %v548 = vld [vmem:[#allocation2 + $0x148] sm:$0xff]
    %v549 = vld [vmem:[#allocation2 + $0x150] sm:$0xff]
    %v550 = vld [vmem:[#allocation2 + $0x158] sm:$0xff]
    %v551 = vld [vmem:[#allocation2 + $0x160] sm:$0xff]
    %v552 = vld [vmem:[#allocation2 + $0x168] sm:$0xff]
    %v553 = vld [vmem:[#allocation2 + $0x170] sm:$0xff]
    %v554 = vld [vmem:[#allocation2 + $0x178] sm:$0xff]
    %s555 = scalar_lea.vmem [#allocation2], 384
    %v556 = vld [vmem:[%s555] ss:$8 sm:$0xf]
    %v557 = vld [vmem:[%s0] sm:$0xff]
    %v558 = vld [vmem:[%s0 + $0x8] sm:$0xff]
    %v559 = vld [vmem:[%s0 + $0x10] sm:$0xff]
    %v560 = vld [vmem:[%s0 + $0x18] sm:$0xff]
    %v562 = vsel %vm146, %v175, 0
    %564 = vmatpush.msra.mxu0 0.0
    %565 = vmatpush.msra.mxu0 0.0
    %566 = vmatpush.msra.mxu0 0.0
    %567 = vmatpush.msra.mxu0 0.0
    %568 = vmatpush.msra.mxu0 0.0
    %569 = vmatpush.msra.mxu0 0.0
    %570 = vmatpush.msra.mxu0 0.0
    %571 = vmatpush.msra.mxu0 0.0
    %572 = vmatpush.msra.mxu0 %v535
    %573 = vmatpush.msra.mxu0 %v531
    %574 = vmatpush.msra.mxu0 %v527
    %575 = vmatpush.msra.mxu0 %v523
    %576 = vmatpush.msra.mxu0 %v519
    %577 = vmatpush.msra.mxu0 %v515
    %578 = vmatpush.msra.mxu0 %v511
    %579 = vmatpush.msra.mxu0 %v507
    %580 = vmatmul.f32.gmra.mxu0 %v562
    %v581 = vpop.f32.mrf.mxu0
    %v582 = vadd.f32 0.0, %v581
    %583 = vdwg.mxu0
    %584 = vmatpush.msra.mxu0 0.0
    %585 = vmatpush.msra.mxu0 0.0
    %586 = vmatpush.msra.mxu0 0.0
    %587 = vmatpush.msra.mxu0 0.0
    %588 = vmatpush.msra.mxu0 0.0
    %589 = vmatpush.msra.mxu0 0.0
    %590 = vmatpush.msra.mxu0 0.0
    %591 = vmatpush.msra.mxu0 0.0
    %592 = vmatpush.msra.mxu0 %v536
    %593 = vmatpush.msra.mxu0 %v532
    %594 = vmatpush.msra.mxu0 %v528
    %595 = vmatpush.msra.mxu0 %v524
    %596 = vmatpush.msra.mxu0 %v520
    %597 = vmatpush.msra.mxu0 %v516
    %598 = vmatpush.msra.mxu0 %v512
    %599 = vmatpush.msra.mxu0 %v508
    %600 = vmatmul.f32.gmra.mxu0 %v562
    %v601 = vpop.f32.mrf.mxu0
    %v602 = vadd.f32 0.0, %v601
    %603 = vdwg.mxu0
    %604 = vmatpush.msra.mxu0 0.0
    %605 = vmatpush.msra.mxu0 0.0
    %606 = vmatpush.msra.mxu0 0.0
    %607 = vmatpush.msra.mxu0 0.0
    %608 = vmatpush.msra.mxu0 0.0
    %609 = vmatpush.msra.mxu0 0.0
    %610 = vmatpush.msra.mxu0 0.0
    %611 = vmatpush.msra.mxu0 0.0
    %612 = vmatpush.msra.mxu0 %v537
    %613 = vmatpush.msra.mxu0 %v533
    %614 = vmatpush.msra.mxu0 %v529
    %615 = vmatpush.msra.mxu0 %v525
    %616 = vmatpush.msra.mxu0 %v521
    %617 = vmatpush.msra.mxu0 %v517
    %618 = vmatpush.msra.mxu0 %v513
    %619 = vmatpush.msra.mxu0 %v509
    %620 = vmatmul.f32.gmra.mxu0 %v562
    %v621 = vpop.f32.mrf.mxu0
    %v622 = vadd.f32 0.0, %v621
    %623 = vdwg.mxu0
    %624 = vmatpush.msra.mxu0 0.0
    %625 = vmatpush.msra.mxu0 0.0
    %626 = vmatpush.msra.mxu0 0.0
    %627 = vmatpush.msra.mxu0 0.0
    %628 = vmatpush.msra.mxu0 0.0
    %629 = vmatpush.msra.mxu0 0.0
    %630 = vmatpush.msra.mxu0 0.0
    %631 = vmatpush.msra.mxu0 0.0
    %632 = vmatpush.msra.mxu0 %v538
    %633 = vmatpush.msra.mxu0 %v534
    %634 = vmatpush.msra.mxu0 %v530
    %635 = vmatpush.msra.mxu0 %v526
    %636 = vmatpush.msra.mxu0 %v522
    %637 = vmatpush.msra.mxu0 %v518
    %638 = vmatpush.msra.mxu0 %v514
    %639 = vmatpush.msra.mxu0 %v510
    %640 = vmatmul.f32.gmra.mxu0 %v562
    %v641 = vpop.f32.mrf.mxu0
    %v642 = vadd.f32 0.0, %v641
    %643 = vdwg.mxu0
    %v644 = vadd.f32 %v557, %v582
    %v645 = vadd.f32 %v558, %v602
    %v646 = vadd.f32 %v559, %v622
    %v647 = vadd.f32 %v560, %v642
    %vm648 = vcmask 261120
    %v650 = vsel %vm648, %v506, 0
    %652 = vmatpush.msra.mxu0 0.0
    %653 = vmatpush.msra.mxu0 0.0
    %654 = vmatpush.msra.mxu0 0.0
    %655 = vmatpush.msra.mxu0 0.0
    %656 = vmatpush.msra.mxu0 0.0
    %657 = vmatpush.msra.mxu0 0.0
    %658 = vmatpush.msra.mxu0 0.0
    %659 = vmatpush.msra.mxu0 0.0
    %660 = vmatpush.msra.mxu0 0.0
    %661 = vmatpush.msra.mxu0 0.0
    %662 = vmatpush.msra.mxu0 0.0
    %663 = vmatpush.msra.mxu0 0.0
    %664 = vmatpush.msra.mxu0 %v551
    %665 = vmatpush.msra.mxu0 %v547
    %666 = vmatpush.msra.mxu0 %v543
    %667 = vmatpush.msra.mxu0 %v539
    %668 = vmatmul.f32.gmra.mxu0 %v650
    %v669 = vpop.f32.mrf.mxu0
    %v670 = vadd.f32 0.0, %v669
    %671 = vdwg.mxu0
    %672 = vmatpush.msra.mxu0 0.0
    %673 = vmatpush.msra.mxu0 0.0
    %674 = vmatpush.msra.mxu0 0.0
    %675 = vmatpush.msra.mxu0 0.0
    %676 = vmatpush.msra.mxu0 0.0
    %677 = vmatpush.msra.mxu0 0.0
    %678 = vmatpush.msra.mxu0 0.0
    %679 = vmatpush.msra.mxu0 0.0
    %680 = vmatpush.msra.mxu0 0.0
    %681 = vmatpush.msra.mxu0 0.0
    %682 = vmatpush.msra.mxu0 0.0
    %683 = vmatpush.msra.mxu0 0.0
    %684 = vmatpush.msra.mxu0 %v552
    %685 = vmatpush.msra.mxu0 %v548
    %686 = vmatpush.msra.mxu0 %v544
    %687 = vmatpush.msra.mxu0 %v540
    %688 = vmatmul.f32.gmra.mxu0 %v650
    %v689 = vpop.f32.mrf.mxu0
    %v690 = vadd.f32 0.0, %v689
    %691 = vdwg.mxu0
    %692 = vmatpush.msra.mxu0 0.0
    %693 = vmatpush.msra.mxu0 0.0
    %694 = vmatpush.msra.mxu0 0.0
    %695 = vmatpush.msra.mxu0 0.0
    %696 = vmatpush.msra.mxu0 0.0
    %697 = vmatpush.msra.mxu0 0.0
    %698 = vmatpush.msra.mxu0 0.0
    %699 = vmatpush.msra.mxu0 0.0
    %700 = vmatpush.msra.mxu0 0.0
    %701 = vmatpush.msra.mxu0 0.0
    %702 = vmatpush.msra.mxu0 0.0
    %703 = vmatpush.msra.mxu0 0.0
    %704 = vmatpush.msra.mxu0 %v553
    %705 = vmatpush.msra.mxu0 %v549
    %706 = vmatpush.msra.mxu0 %v545
    %707 = vmatpush.msra.mxu0 %v541
    %708 = vmatmul.f32.gmra.mxu0 %v650
    %v709 = vpop.f32.mrf.mxu0
    %v710 = vadd.f32 0.0, %v709
    %711 = vdwg.mxu0
    %712 = vmatpush.msra.mxu0 0.0
    %713 = vmatpush.msra.mxu0 0.0
    %714 = vmatpush.msra.mxu0 0.0
    %715 = vmatpush.msra.mxu0 0.0
    %716 = vmatpush.msra.mxu0 0.0
    %717 = vmatpush.msra.mxu0 0.0
    %718 = vmatpush.msra.mxu0 0.0
    %719 = vmatpush.msra.mxu0 0.0
    %720 = vmatpush.msra.mxu0 0.0
    %721 = vmatpush.msra.mxu0 0.0
    %722 = vmatpush.msra.mxu0 0.0
    %723 = vmatpush.msra.mxu0 0.0
    %724 = vmatpush.msra.mxu0 %v554
    %725 = vmatpush.msra.mxu0 %v550
    %726 = vmatpush.msra.mxu0 %v546
    %727 = vmatpush.msra.mxu0 %v542
    %728 = vmatmul.f32.gmra.mxu0 %v650
    %v729 = vpop.f32.mrf.mxu0
    %v730 = vadd.f32 0.0, %v729
    %731 = vdwg.mxu0
    %v732 = vadd.f32 %v644, %v670
    %v733 = vadd.f32 %v645, %v690
    %v734 = vadd.f32 %v646, %v710
    %v735 = vadd.f32 %v647, %v730
    %v737 = vperm.slane %v556, 0
    %v738 = vperm.slane %v556, 1
    %v739 = vperm.slane %v556, 2
    %v740 = vperm.slane %v556, 3
    %v745 = vadd.f32 %v732, %v737
    %v746 = vadd.f32 %v733, %v738
    %v747 = vadd.f32 %v734, %v739
    %v748 = vadd.f32 %v735, %v740
    %749 = vst [vmem:[%s6] sm:$0xff] %v745
    %750 = vst [vmem:[%s6 + $0x8] sm:$0xff] %v746
    %751 = vst [vmem:[%s6 + $0x10] sm:$0xff] %v747
    %752 = vst [vmem:[%s6 + $0x18] sm:$0xff] %v748
    // Predicated region
    $region30: #{diffusion_forward.1} parent=1 // pred_check
      _
    $region31: #{diffusion_forward.1} parent=1 // pred_check_branch
      %754 = sbr.rel (0) target = $region33
    $region32: #{diffusion_forward.1} parent=1 // pred_region
      _
    $region33: #{diffusion_forward.1} parent=1 // pred_fallthru
      _
    // Predicated region
    $region34: #{diffusion_forward.1} parent=1 // pred_check
      _
    $region35: #{diffusion_forward.1} parent=1 // pred_check_branch
      %756 = sbr.rel (0) target = $region37
    $region36: #{diffusion_forward.1} parent=1 // pred_region
      _
    $region37: #{diffusion_forward.1} parent=1 // pred_fallthru
      _
    %757 = vsyncpa [#allocation3], 1

</llo_original>
